<compile_context>
chip_gen: v6e
topology: v6e:2x2x1
jax: 0.10.0
libtpu: 0.0.40
codegen_flags: <defaults>
</compile_context>

<pallas_src>
import functools
import math

import jax
import jax.numpy as jnp
from jax.experimental import pallas as pl
from jax.experimental.pallas import tpu as pltpu

_LANES = 128
_SUBLANES = 8
_DEFAULT_BLOCK_BYTES = 2 * 1024 * 1024   # ~2 MiB per input block (4096 f32 rows)
_NUM_CORE_SPLITS = 2                     # v7x: 2 TCs; harmless serial loop on v5e/v6e


def _cdiv(a, b):
    return -(-a // b)


def _round_up(x, m):
    return _cdiv(x, m) * m


def _scoped_vmem_limit_bytes():
    """Generation-aware scoped-VMEM limit (<= half of physical VMEM)."""
    limit = 32 * 1024 * 1024
    try:
        cap = int(pltpu.get_tpu_info().vmem_capacity_bytes)
        limit = min(max(cap // 2, 16 * 1024 * 1024), 64 * 1024 * 1024)
    except Exception:
        pass
    return limit


def _to_slab(x):
    """Flatten to a lane-dense [rows, 128] slab in the native dtype.

    The flatten/reshape is a free view when numel % 128 == 0.  Otherwise a
    minimal pad to the next multiple of 128 is emitted; pad values are never
    read into the result (in-kernel flat_idx < n mask), so 0 is fine.
    """
    flat = x.reshape(-1)
    n = flat.shape[0]
    rows = _cdiv(n, _LANES)
    if n != rows * _LANES:
        # TODO(synk): a manual-DMA path over the raw (B*T, F) view would remove
        # even this copy for feature counts that are not lane multiples.
        flat = jnp.pad(flat, (0, rows * _LANES - n))
    return flat.reshape(rows, _LANES), rows


def _make_kernel(*, n_elems, feat, key_num, tile_rows, steps_per_core, n_tiles):
    tile_elems = tile_rows * _LANES

    def kernel(p_ref, t_ref, out_ref):
        c = pl.program_id(0)          # core-split index ("parallel")
        s = pl.program_id(1)          # streaming step   ("arbitrary")

        @pl.when(s == 0)
        def _init():
            out_ref[...] = jnp.zeros_like(out_ref)

        p = p_ref[...].astype(jnp.float32)
        t = t_ref[...].astype(jnp.float32)

        # Logical tile this (core, step) slot owns.  The input index_map clamps
        # to the last real tile, so rebuild the clamped id to get the flat
        # element index of what was actually loaded, and mask the whole slot
        # when it lies beyond the real tile range (odd tile counts).
        tile = c * steps_per_core + s
        tile_clamped = jnp.minimum(tile, n_tiles - 1)

        row = jax.lax.broadcasted_iota(jnp.int32, (tile_rows, _LANES), 0)
        lane = jax.lax.broadcasted_iota(jnp.int32, (tile_rows, _LANES), 1)
        flat_idx = tile_clamped * tile_elems + row * _LANES + lane

        valid = jnp.logical_and(flat_idx < n_elems, tile < n_tiles)
        is_key = (flat_idx % feat) < key_num

        # Numerically stable BCEWithLogits (key lanes) and SmoothL1, beta=1
        # (mouse lanes).  Garbage in masked positions is discarded by the
        # selects below (select does not propagate NaN from the dead branch).
        bce = jnp.maximum(p, 0.0) - p * t + jnp.log1p(jnp.exp(-jnp.abs(p)))
        d = p - t
        ad = jnp.abs(d)
        sl1 = jnp.where(ad < 1.0, 0.5 * d * d, ad - 0.5)

        key_e = jnp.where(jnp.logical_and(valid, is_key), bce, 0.0)
        mouse_e = jnp.where(jnp.logical_and(valid, jnp.logical_not(is_key)), sl1, 0.0)

        # (tile_rows, 128) -> (8, 128) partials: pure VPU adds (no XLU here);
        # the cross-lane reduce happens once, in the wrapper, on 2*2*8*128 vals.
        key_p = jnp.sum(key_e.reshape(tile_rows // _SUBLANES, _SUBLANES, _LANES), axis=0)
        mouse_p = jnp.sum(mouse_e.reshape(tile_rows // _SUBLANES, _SUBLANES, _LANES), axis=0)

        out_ref[0, 0] = out_ref[0, 0] + key_p
        out_ref[0, 1] = out_ref[0, 1] + mouse_p

    return kernel


def multi_task_loss(pred, target, key_num=5, key_loss_weight=1.0,
                    mouse_loss_weight=1.0, max_block_bytes=_DEFAULT_BLOCK_BYTES):
    """total = kw * BCEWithLogits(pred[...,:k], tgt[...,:k]) + mw * SmoothL1(pred[...,k:], tgt[...,k:])"""
    assert pred.shape == target.shape
    feat = pred.shape[-1]
    n_elems = math.prod(pred.shape)
    n_rows_logical = n_elems // feat                    # = B * T
    n_key = n_rows_logical * min(key_num, feat)
    n_mouse = n_rows_logical * max(feat - key_num, 0)

    p_slab, rows = _to_slab(pred)
    t_slab, _ = _to_slab(target)

    itemsize = max(jnp.dtype(pred.dtype).itemsize, jnp.dtype(target.dtype).itemsize)
    max_rows = max(16, (max_block_bytes // (_LANES * itemsize)) // 16 * 16)
    tile_rows = min(max_rows, _round_up(rows, 16))      # multiple of 16 (bf16 packing)
    n_tiles = _cdiv(rows, tile_rows)
    steps_per_core = _cdiv(n_tiles, _NUM_CORE_SPLITS)

    kernel = _make_kernel(n_elems=n_elems, feat=feat, key_num=key_num,
                          tile_rows=tile_rows, steps_per_core=steps_per_core,
                          n_tiles=n_tiles)

    def in_map(c, s):
        # Clamp so odd tile counts never produce a fully out-of-bounds block;
        # the kernel masks out the duplicated (clamped) slot.
        return (jnp.minimum(c * steps_per_core + s, n_tiles - 1), 0)

    partials = pl.pallas_call(
        kernel,
        out_shape=jax.ShapeDtypeStruct(
            (_NUM_CORE_SPLITS, 2, _SUBLANES, _LANES), jnp.float32),
        grid=(_NUM_CORE_SPLITS, steps_per_core),
        in_specs=[
            pl.BlockSpec((tile_rows, _LANES), in_map),
            pl.BlockSpec((tile_rows, _LANES), in_map),
        ],
        out_specs=pl.BlockSpec((1, 2, _SUBLANES, _LANES), lambda c, s: (c, 0, 0, 0)),
        compiler_params=pltpu.CompilerParams(
            dimension_semantics=("parallel", "arbitrary"),
            vmem_limit_bytes=_scoped_vmem_limit_bytes()),
    )(p_slab, t_slab)

    key_sum = jnp.sum(partials[:, 0])
    mouse_sum = jnp.sum(partials[:, 1])

    loss = jnp.zeros((), jnp.float32)
    if n_key > 0:
        loss = loss + key_loss_weight * key_sum / n_key
    if n_mouse > 0:
        loss = loss + mouse_loss_weight * mouse_sum / n_mouse
    return loss


# ---------------------------------------------------------------------------
# reference + demo / correctness check
# ---------------------------------------------------------------------------
def _ref_loss(pred, target, key_num, kw, mw):
    pk, pm = pred[..., :key_num], pred[..., key_num:]
    tk, tm = target[..., :key_num], target[..., key_num:]
    bce = jnp.maximum(pk, 0.0) - pk * tk + jnp.log1p(jnp.exp(-jnp.abs(pk)))
    d = pm - tm
    ad = jnp.abs(d)
    sl1 = jnp.where(ad < 1.0, 0.5 * d * d, ad - 0.5)
    return kw * jnp.mean(bce) + mw * jnp.mean(sl1)


if __name__ == "__main__":
    # Config from the spec: batch_size=1, time_steps=4, key_num=5, mouse dims=2.
    B, T, KEY_NUM, MOUSE_DIM = 1, 4, 5, 2
    F = KEY_NUM + MOUSE_DIM

    key = jax.random.PRNGKey(0)
    k1, k2, k3 = jax.random.split(key, 3)
    pred = jax.random.normal(k1, (B, T, F), jnp.float32)
    tgt_keys = (jax.random.uniform(k2, (B, T, KEY_NUM)) > 0.5).astype(jnp.float32)
    tgt_mouse = jax.random.normal(k3, (B, T, MOUSE_DIM), jnp.float32)
    target = jnp.concatenate([tgt_keys, tgt_mouse], axis=-1)

    loss_fn = jax.jit(functools.partial(multi_task_loss, key_num=KEY_NUM,
                                        key_loss_weight=1.0, mouse_loss_weight=1.0))
    total = loss_fn(pred, target)
    jax.block_until_ready(total)
    ref = _ref_loss(pred, target, KEY_NUM, 1.0, 1.0)
    assert jnp.allclose(total, ref, atol=1e-5, rtol=1e-4), (total, ref)

    # Second small case that exercises multi-tile streaming, the 2-way core
    # split, index-map clamping and tail masking (tiny blocks forced).
    B2, T2 = 2, 300
    k4, k5, k6 = jax.random.split(jax.random.PRNGKey(1), 3)
    pred2 = jax.random.normal(k4, (B2, T2, F), jnp.float32)
    target2 = jnp.concatenate(
        [(jax.random.uniform(k5, (B2, T2, KEY_NUM)) > 0.5).astype(jnp.float32),
         jax.random.normal(k6, (B2, T2, MOUSE_DIM), jnp.float32)], axis=-1)
    loss_fn2 = jax.jit(functools.partial(multi_task_loss, key_num=KEY_NUM,
                                         key_loss_weight=1.0, mouse_loss_weight=1.0,
                                         max_block_bytes=8 * 1024))
    total2 = loss_fn2(pred2, target2)
    jax.block_until_ready(total2)
    ref2 = _ref_loss(pred2, target2, KEY_NUM, 1.0, 1.0)
    assert jnp.allclose(total2, ref2, atol=1e-5, rtol=1e-4), (total2, ref2)

    print("KERNEL_OK")
</pallas_src>

<mosaic_0001>
module attributes {stable_mosaic.version = 11 : i64} {
  func.func @kernel(%arg0: i32, %arg1: i32, %arg2: memref<16x128xf32, #tpu.memory_space<vmem>>, %arg3: memref<16x128xf32, #tpu.memory_space<vmem>>, %arg4: memref<1x2x8x128xf32, #tpu.memory_space<vmem>>) attributes {dimension_semantics = [#tpu.dimension_semantics<parallel>, #tpu.dimension_semantics<arbitrary>], iteration_bounds = array<i64: 2, 1>, scalar_prefetch = 0 : i64, scratch_operands = 0 : i64, tpu.core_type = #tpu.core_type<tc>, window_params = [{transform_indices = @transform_0, window_bounds = array<i64: 16, 128>}, {transform_indices = @transform_1, window_bounds = array<i64: 16, 128>}, {transform_indices = @transform_2, window_bounds = array<i64: 1, 2, 8, 128>}]} {
    %c0_i32 = arith.constant 0 : i32
    %0 = arith.cmpi eq, %arg1, %c0_i32 : i32
    %1 = arith.extui %0 : i1 to i32
    %c0_i32_0 = arith.constant 0 : i32
    %2 = arith.cmpi ne, %1, %c0_i32_0 : i32
    scf.if %2 {
      %cst_35 = arith.constant 0.000000e+00 : f32
      %82 = vector.broadcast %cst_35 : f32 to vector<1x2x8x128xf32>
      %c0_36 = arith.constant 0 : index
      %c0_37 = arith.constant 0 : index
      %c0_38 = arith.constant 0 : index
      %c0_39 = arith.constant 0 : index
      %83 = vector.load %arg4[%c0_36, %c0_37, %c0_38, %c0_39] : memref<1x2x8x128xf32, #tpu.memory_space<vmem>>, vector<1x2x8x128xf32>
      tpu.vector_store %arg4[%c0_36, %c0_37, %c0_38, %c0_39], %82 {strides = array<i32>} : memref<1x2x8x128xf32, #tpu.memory_space<vmem>>, vector<1x2x8x128xf32>,
    } else {
    }
    %c0 = arith.constant 0 : index
    %c0_1 = arith.constant 0 : index
    %3 = vector.load %arg2[%c0, %c0_1] : memref<16x128xf32, #tpu.memory_space<vmem>>, vector<16x128xf32>
    %c0_2 = arith.constant 0 : index
    %c0_3 = arith.constant 0 : index
    %4 = vector.load %arg3[%c0_2, %c0_3] : memref<16x128xf32, #tpu.memory_space<vmem>>, vector<16x128xf32>
    %c1_i32 = arith.constant 1 : i32
    %5 = arith.muli %arg0, %c1_i32 : i32
    %6 = arith.addi %5, %arg1 : i32
    %c0_i32_4 = arith.constant 0 : i32
    %7 = arith.minsi %6, %c0_i32_4 : i32
    %8 = tpu.iota {dimensions = array<i32: 0>} : vector<16x128xi32>
    %9 = tpu.iota {dimensions = array<i32: 1>} : vector<16x128xi32>
    %c2048_i32 = arith.constant 2048 : i32
    %10 = arith.muli %7, %c2048_i32 : i32
    %c128_i32 = arith.constant 128 : i32
    %11 = vector.broadcast %c128_i32 : i32 to vector<16x128xi32>
    %12 = arith.muli %8, %11 : vector<16x128xi32>
    %13 = vector.broadcast %10 : i32 to vector<16x128xi32>
    %14 = arith.addi %13, %12 : vector<16x128xi32>
    %15 = arith.addi %14, %9 : vector<16x128xi32>
    %c28_i32 = arith.constant 28 : i32
    %16 = vector.broadcast %c28_i32 : i32 to vector<16x128xi32>
    %17 = arith.cmpi slt, %15, %16 : vector<16x128xi32>
    %c1_i32_5 = arith.constant 1 : i32
    %18 = arith.cmpi slt, %6, %c1_i32_5 : i32
    %19 = vector.broadcast %18 : i1 to vector<16x128xi1>
    %20 = arith.andi %17, %19 : vector<16x128xi1>
    %c7_i32 = arith.constant 7 : i32
    %c0_i32_6 = arith.constant 0 : i32
    %21 = arith.cmpi eq, %c7_i32, %c0_i32_6 : i32
    %c1_i32_7 = arith.constant 1 : i32
    %22 = arith.select %21, %c1_i32_7, %c7_i32 : i32
    %23 = vector.broadcast %22 : i32 to vector<16x128xi32>
    %24 = arith.remsi %15, %23 : vector<16x128xi32>
    %c0_i32_8 = arith.constant 0 : i32
    %25 = vector.broadcast %c0_i32_8 : i32 to vector<16x128xi32>
    %26 = arith.cmpi ne, %24, %25 : vector<16x128xi32>
    %c0_i32_9 = arith.constant 0 : i32
    %27 = vector.broadcast %c0_i32_9 : i32 to vector<16x128xi32>
    %28 = arith.cmpi slt, %24, %27 : vector<16x128xi32>
    %c0_i32_10 = arith.constant 0 : i32
    %29 = arith.cmpi slt, %22, %c0_i32_10 : i32
    %30 = vector.broadcast %29 : i1 to vector<16x128xi1>
    %31 = vector.broadcast %30 : vector<16x128xi1> to vector<16x128xi1>
    %32 = arith.xori %28, %31 : vector<16x128xi1>
    %33 = arith.andi %32, %26 : vector<16x128xi1>
    %34 = vector.broadcast %22 : i32 to vector<16x128xi32>
    %35 = arith.addi %24, %34 : vector<16x128xi32>
    %36 = arith.select %33, %35, %24 : vector<16x128xi1>, vector<16x128xi32>
    %c5_i32 = arith.constant 5 : i32
    %37 = vector.broadcast %c5_i32 : i32 to vector<16x128xi32>
    %38 = arith.cmpi slt, %36, %37 : vector<16x128xi32>
    %cst = arith.constant 0.000000e+00 : f32
    %39 = vector.broadcast %cst : f32 to vector<16x128xf32>
    %40 = arith.maximumf %3, %39 : vector<16x128xf32>
    %41 = arith.mulf %3, %4 : vector<16x128xf32>
    %42 = arith.subf %40, %41 : vector<16x128xf32>
    %43 = math.absf %3 : vector<16x128xf32>
    %cst_11 = arith.constant 0.000000e+00 : f32
    %44 = vector.broadcast %cst_11 : f32 to vector<16x128xf32>
    %45 = arith.subf %44, %43 : vector<16x128xf32>
    %46 = math.exp %45 : vector<16x128xf32>
    %47 = math.log1p %46 : vector<16x128xf32>
    %48 = arith.addf %42, %47 : vector<16x128xf32>
    %49 = arith.subf %3, %4 : vector<16x128xf32>
    %50 = math.absf %49 : vector<16x128xf32>
    %cst_12 = arith.constant 1.000000e+00 : f32
    %51 = vector.broadcast %cst_12 : f32 to vector<16x128xf32>
    %52 = arith.cmpf olt, %50, %51 : vector<16x128xf32>
    %cst_13 = arith.constant 5.000000e-01 : f32
    %53 = vector.broadcast %cst_13 : f32 to vector<16x128xf32>
    %54 = arith.mulf %53, %49 : vector<16x128xf32>
    %55 = arith.mulf %54, %49 : vector<16x128xf32>
    %cst_14 = arith.constant 5.000000e-01 : f32
    %56 = vector.broadcast %cst_14 : f32 to vector<16x128xf32>
    %57 = arith.subf %50, %56 : vector<16x128xf32>
    %58 = arith.select %52, %55, %57 : vector<16x128xi1>, vector<16x128xf32>
    %59 = arith.andi %20, %38 : vector<16x128xi1>
    %cst_15 = arith.constant 0.000000e+00 : f32
    %60 = vector.broadcast %cst_15 : f32 to vector<16x128xf32>
    %61 = arith.select %59, %48, %60 : vector<16x128xi1>, vector<16x128xf32>
    %cst_16 = arith.constant dense<true> : vector<16x128xi1>
    %62 = arith.xori %38, %cst_16 : vector<16x128xi1>
    %63 = arith.andi %20, %62 : vector<16x128xi1>
    %cst_17 = arith.constant 0.000000e+00 : f32
    %64 = vector.broadcast %cst_17 : f32 to vector<16x128xf32>
    %65 = arith.select %63, %58, %64 : vector<16x128xi1>, vector<16x128xf32>
    %66 = vector.shape_cast %61 : vector<16x128xf32> to vector<2x8x128xf32>
    %cst_18 = arith.constant dense<0.000000e+00> : vector<8x128xf32>
    %67 = vector.multi_reduction <add>, %66, %cst_18 [0] : vector<2x8x128xf32> to vector<8x128xf32>
    %68 = vector.shape_cast %65 : vector<16x128xf32> to vector<2x8x128xf32>
    %cst_19 = arith.constant dense<0.000000e+00> : vector<8x128xf32>
    %69 = vector.multi_reduction <add>, %68, %cst_19 [0] : vector<2x8x128xf32> to vector<8x128xf32>
    %c0_20 = arith.constant 0 : index
    %c0_21 = arith.constant 0 : index
    %c0_22 = arith.constant 0 : index
    %c0_23 = arith.constant 0 : index
    %70 = vector.load %arg4[%c0_20, %c0_21, %c0_22, %c0_23] : memref<1x2x8x128xf32, #tpu.memory_space<vmem>>, vector<1x1x8x128xf32>
    %71 = vector.shape_cast %70 : vector<1x1x8x128xf32> to vector<8x128xf32>
    %72 = arith.addf %71, %67 : vector<8x128xf32>
    %c0_24 = arith.constant 0 : index
    %c0_25 = arith.constant 0 : index
    %c0_26 = arith.constant 0 : index
    %c0_27 = arith.constant 0 : index
    %73 = vector.load %arg4[%c0_24, %c0_25, %c0_26, %c0_27] : memref<1x2x8x128xf32, #tpu.memory_space<vmem>>, vector<1x1x8x128xf32>
    %74 = vector.shape_cast %73 : vector<1x1x8x128xf32> to vector<8x128xf32>
    %75 = vector.shape_cast %72 : vector<8x128xf32> to vector<1x1x8x128xf32>
    tpu.vector_store %arg4[%c0_24, %c0_25, %c0_26, %c0_27], %75 {strides = array<i32>} : memref<1x2x8x128xf32, #tpu.memory_space<vmem>>, vector<1x1x8x128xf32>,
    %c0_28 = arith.constant 0 : index
    %c1 = arith.constant 1 : index
    %c0_29 = arith.constant 0 : index
    %c0_30 = arith.constant 0 : index
    %76 = vector.load %arg4[%c0_28, %c1, %c0_29, %c0_30] : memref<1x2x8x128xf32, #tpu.memory_space<vmem>>, vector<1x1x8x128xf32>
    %77 = vector.shape_cast %76 : vector<1x1x8x128xf32> to vector<8x128xf32>
    %78 = arith.addf %77, %69 : vector<8x128xf32>
    %c0_31 = arith.constant 0 : index
    %c1_32 = arith.constant 1 : index
    %c0_33 = arith.constant 0 : index
    %c0_34 = arith.constant 0 : index
    %79 = vector.load %arg4[%c0_31, %c1_32, %c0_33, %c0_34] : memref<1x2x8x128xf32, #tpu.memory_space<vmem>>, vector<1x1x8x128xf32>
    %80 = vector.shape_cast %79 : vector<1x1x8x128xf32> to vector<8x128xf32>
    %81 = vector.shape_cast %78 : vector<8x128xf32> to vector<1x1x8x128xf32>
    tpu.vector_store %arg4[%c0_31, %c1_32, %c0_33, %c0_34], %81 {strides = array<i32>} : memref<1x2x8x128xf32, #tpu.memory_space<vmem>>, vector<1x1x8x128xf32>,
    return
  }
  func.func @transform_0(%arg0: i32, %arg1: i32) -> (i32, i32) {
    %c1_i32 = arith.constant 1 : i32
    %0 = arith.muli %arg0, %c1_i32 : i32
    %1 = arith.addi %0, %arg1 : i32
    %c0_i32 = arith.constant 0 : i32
    %2 = arith.minsi %1, %c0_i32 : i32
    %c0_i32_0 = arith.constant 0 : i32
    %c0_i32_1 = arith.constant 0 : i32
    return %2, %c0_i32_0 : i32, i32
  }
  func.func @transform_1(%arg0: i32, %arg1: i32) -> (i32, i32) {
    %c1_i32 = arith.constant 1 : i32
    %0 = arith.muli %arg0, %c1_i32 : i32
    %1 = arith.addi %0, %arg1 : i32
    %c0_i32 = arith.constant 0 : i32
    %2 = arith.minsi %1, %c0_i32 : i32
    %c0_i32_0 = arith.constant 0 : i32
    %c0_i32_1 = arith.constant 0 : i32
    return %2, %c0_i32_0 : i32, i32
  }
  func.func @transform_2(%arg0: i32, %arg1: i32) -> (i32, i32, i32, i32) {
    %c0_i32 = arith.constant 0 : i32
    %c0_i32_0 = arith.constant 0 : i32
    %c0_i32_1 = arith.constant 0 : i32
    %c0_i32_2 = arith.constant 0 : i32
    return %arg0, %c0_i32, %c0_i32_0, %c0_i32_1 : i32, i32, i32, i32
  }
}

</mosaic_0001>

<llo_original>
// kernel: multi_task_loss.1
$region0: #{multi_task_loss.1}
  #allocation0 [shape = 'u32[]', space=smem, size = 0x4, offset = 0x4, fixed_abs, tag = 'smem constant byte address 0x4 - core index']
  #allocation1 [shape = 'u32[144,128]{1,0:T(1,128)}', space=vmem, size = 0x12000, scoped, tag = 'internal scratch']
  %s0 = inlined_call_operand.vmem [shape: f32[1,128], index: 0, kind: input, shape index: {}]
  %s1 = inlined_call_operand.vmem [shape: f32[1,128], index: 1, kind: input, shape index: {}]
  %s2 = inlined_call_operand.vmem [shape: f32[2,2,8,128], index: 2, kind: output, shape index: {}]
  %s3 = sld [smem:[#allocation0]]
  $region45: #{multi_task_loss.1} parent=0
    _
  %s5 = ssub.s32 1, %s3
  %s6 = scalar_select 0, %s5, %s3
  loop: start=0, step=1, limit=4
  $region2: #{multi_task_loss.1} parent=0 // loop_pre_header
    _
  $region3: #{multi_task_loss.1} parent=0 // loop_header
    %s8 = sphi 0, %s12
    %p9 = scmp.ge.s32.totalorder %s8, 4
    %s15 = sphi 0, %s27
    %s16 = sphi 0, %s23
    %s17 = sphi 0, %s15
    %s18 = sphi 0, %s16
    %s19 = sphi 0, %s17
    %s20 = sphi 0, %s18
    %s36 = sphi 0, %s38
    %s39 = sphi 0, %s36
    %s40 = sphi 0, %s39
    %s56 = sphi 0, %s40
    %s68 = sphi 0, %s70
    %s71 = sphi 0, %s68
    %s72 = sphi 0, %s71
    %s88 = sphi 0, %s72
    %s94 = sphi 0, %s96
    %s97 = sphi 0, %s94
    %s98 = sphi 0, %s97
    %s114 = sphi 0, %s98
  $region4: #{multi_task_loss.1} parent=0 // loop_header_branch
    %11 = sbr.rel (%p9) target = $region8
  $region5: #{multi_task_loss.1} parent=0 // loop_body
    %s13 = ssub.s32 %s8, 1
    %s14 = ssub.s32 %s8, 2
    %s21 = sadd.s32 1, %s16
    %p22 = scmp.ge.s32.totalorder %s21, 1
    %s23 = scalar_select %p22, 0, %s21
    %s24 = sadd.s32 1, %s15
    %s25 = scalar_select %p22, %s24, %s15
    %p26 = scmp.ge.s32.totalorder %s25, 2
    %s27 = scalar_select %p26, 0, %s25
    %s28 = sadd.s32 %s15, %s16
    %p29 = scmp.lt.s32.totalorder %s28, 0
    %s30 = scalar_select %p29, %s28, 0
    %s31 = sadd.s32 %s27, %s23
    %p32 = scmp.lt.s32.totalorder %s31, 0
    %s33 = scalar_select %p32, %s31, 0
    %s34 = ssub.s32 %s30, %s33
    %p35 = scmp.eq.s32.totalorder %s34, 0
    %s37 = sadd.s32 %s36, 1
    %s38 = scalar_select %p35, %s36, %s37
    %p41 = pneg %p35
    %p42 = scmp.eq.s32.totalorder %s8, 1
    %p43 = por %p41, %p42
    %p44 = scmp.ne.s32.totalorder %s36, %s39
    %p45 = scmp.eq.s32.totalorder %s8, 0
    %p46 = por %p44, %p45
    %p47 = scmp.ne.s32.totalorder %s36, %s39
    %p48 = scmp.eq.s32.totalorder %s13, 1
    %p49 = por %p47, %p48
    %p50 = scmp.ne.s32.totalorder %s39, %s40
    %p51 = scmp.eq.s32.totalorder %s13, 0
    %p52 = por %p50, %p51
    %p53 = scmp.ne.s32.totalorder %s39, %s40
    %p54 = scmp.eq.s32.totalorder %s14, 1
    %p55 = por %p53, %p54
    %p57 = scmp.ne.s32.totalorder %s40, %s56
    %p58 = scmp.eq.s32.totalorder %s14, 0
    %p59 = por %p57, %p58
    %s60 = sadd.s32 %s15, %s16
    %p61 = scmp.lt.s32.totalorder %s60, 0
    %s62 = scalar_select %p61, %s60, 0
    %s63 = sadd.s32 %s27, %s23
    %p64 = scmp.lt.s32.totalorder %s63, 0
    %s65 = scalar_select %p64, %s63, 0
    %s66 = ssub.s32 %s62, %s65
    %p67 = scmp.eq.s32.totalorder %s66, 0
    %s69 = sadd.s32 %s68, 1
    %s70 = scalar_select %p67, %s68, %s69
    %p73 = pneg %p67
    %p74 = scmp.eq.s32.totalorder %s8, 1
    %p75 = por %p73, %p74
    %p76 = scmp.ne.s32.totalorder %s68, %s71
    %p77 = scmp.eq.s32.totalorder %s8, 0
    %p78 = por %p76, %p77
    %p79 = scmp.ne.s32.totalorder %s68, %s71
    %p80 = scmp.eq.s32.totalorder %s13, 1
    %p81 = por %p79, %p80
    %p82 = scmp.ne.s32.totalorder %s71, %s72
    %p83 = scmp.eq.s32.totalorder %s13, 0
    %p84 = por %p82, %p83
    %p85 = scmp.ne.s32.totalorder %s71, %s72
    %p86 = scmp.eq.s32.totalorder %s14, 1
    %p87 = por %p85, %p86
    %p89 = scmp.ne.s32.totalorder %s72, %s88
    %p90 = scmp.eq.s32.totalorder %s14, 0
    %p91 = por %p89, %p90
    %s92 = ssub.s32 %s15, %s27
    %p93 = scmp.eq.s32.totalorder %s92, 0
    %s95 = sadd.s32 %s94, 1
    %s96 = scalar_select %p93, %s94, %s95
    %p99 = pneg %p93
    %p100 = scmp.eq.s32.totalorder %s8, 1
    %p101 = por %p99, %p100
    %p102 = scmp.ne.s32.totalorder %s94, %s97
    %p103 = scmp.eq.s32.totalorder %s8, 0
    %p104 = por %p102, %p103
    %p105 = scmp.ne.s32.totalorder %s94, %s97
    %p106 = scmp.eq.s32.totalorder %s13, 1
    %p107 = por %p105, %p106
    %p108 = scmp.ne.s32.totalorder %s97, %s98
    %p109 = scmp.eq.s32.totalorder %s13, 0
    %p110 = por %p108, %p109
    %p111 = scmp.ne.s32.totalorder %s97, %s98
    %p112 = scmp.eq.s32.totalorder %s14, 1
    %p113 = por %p111, %p112
    %p115 = scmp.ne.s32.totalorder %s98, %s114
    %p116 = scmp.eq.s32.totalorder %s14, 0
    %p117 = por %p115, %p116
    %p118 = scmp.le.s32.totalorder 1, %s8
    %p119 = scmp.lt.s32.totalorder %s8, 3
    %p120 = pnand %p118, %p119
    %p121 = pneg %p120
    // Predicated region
    $region9: #{multi_task_loss.1} parent=5 // pred_check
      _
    $region10: #{multi_task_loss.1} parent=5 // pred_check_branch
      %123 = sbr.rel (%p120) target = $region12
    $region11: #{multi_task_loss.1} parent=5 // pred_region
      %s124 = ssub.s32 %s8, 1
    $region12: #{multi_task_loss.1} parent=5 // pred_fallthru
      _
    %p125 = scmp.lt.s32.totalorder %s8, 2
    // Predicated region
    $region13: #{multi_task_loss.1} parent=5 // pred_check
      %p126 = pneg %p125
    $region14: #{multi_task_loss.1} parent=5 // pred_check_branch
      %128 = sbr.rel (%p126) target = $region16
    $region15: #{multi_task_loss.1} parent=5 // pred_region
      // Predicated region
      $region17: #{multi_task_loss.1} parent=15 // pred_check
        %p129 = pneg %p46
      $region18: #{multi_task_loss.1} parent=15 // pred_check_branch
        %131 = sbr.rel (%p129) target = $region20
      $region19: #{multi_task_loss.1} parent=15 // pred_region
        %s132 = sadd.s32 %s15, %s16
        %p133 = scmp.lt.s32.totalorder %s132, 0
        %s134 = scalar_select %p133, %s132, 0
        %s135 = smul.u32 16, %s134
        %s136 = ssub.s32 1, %s135
        %s137 = smul.u32 16, %s136
        %p138 = scmp.lt.s32.totalorder %s135, 0
        %s139 = scalar_select %p138, %s135, 0
        %s140 = scalar_lea.vmem %s0, %s139
        %s141 = sadd.s32 %s15, %s16
        %p142 = scmp.lt.s32.totalorder %s141, 0
        %s143 = scalar_select %p142, %s141, 0
        %s144 = smul.u32 16, %s143
        %s145 = ssub.s32 1, %s144
        %s146 = smul.u32 16, %s145
      $region20: #{multi_task_loss.1} parent=15 // pred_fallthru
        _
      // Predicated region
      $region21: #{multi_task_loss.1} parent=15 // pred_check
        %p147 = pneg %p78
      $region22: #{multi_task_loss.1} parent=15 // pred_check_branch
        %149 = sbr.rel (%p147) target = $region24
      $region23: #{multi_task_loss.1} parent=15 // pred_region
        %s150 = sadd.s32 %s15, %s16
        %p151 = scmp.lt.s32.totalorder %s150, 0
        %s152 = scalar_select %p151, %s150, 0
        %s153 = smul.u32 16, %s152
        %s154 = ssub.s32 1, %s153
        %s155 = smul.u32 16, %s154
        %p156 = scmp.lt.s32.totalorder %s153, 0
        %s157 = scalar_select %p156, %s153, 0
        %s158 = scalar_lea.vmem %s1, %s157
        %s159 = sadd.s32 %s15, %s16
        %p160 = scmp.lt.s32.totalorder %s159, 0
        %s161 = scalar_select %p160, %s159, 0
        %s162 = smul.u32 16, %s161
        %s163 = ssub.s32 1, %s162
        %s164 = smul.u32 16, %s163
      $region24: #{multi_task_loss.1} parent=15 // pred_fallthru
        _
    $region16: #{multi_task_loss.1} parent=5 // pred_fallthru
      _
    %p165 = scmp.le.s32.totalorder 1, %s8
    %p166 = scmp.lt.s32.totalorder %s8, 3
    %p167 = pnand %p165, %p166
    %p168 = pneg %p167
    // Predicated region
    $region25: #{multi_task_loss.1} parent=5 // pred_check
      _
    $region26: #{multi_task_loss.1} parent=5 // pred_check_branch
      %170 = sbr.rel (%p167) target = $region28
    $region27: #{multi_task_loss.1} parent=5 // pred_region
      %s171 = ssub.s32 %s8, 1
      %s172 = sadd.s32 %s17, %s18
      %p173 = scmp.lt.s32.totalorder %s172, 0
      %s174 = scalar_select %p173, %s172, 0
      %s175 = smul.u32 16, %s174
      %s176 = ssub.s32 1, %s175
      %s177 = smul.u32 16, %s176
      %p178 = scmp.lt.s32.totalorder %s175, 0
      %s179 = scalar_select %p178, %s175, 0
      %s180 = scalar_lea.vmem %s0, %s179
      %p181 = pneg %p52
      %p182 = pneg %p49
      %s183 = sadd.s32 %s17, %s18
      %p184 = scmp.lt.s32.totalorder %s183, 0
      %s185 = scalar_select %p184, %s183, 0
      %s186 = smul.u32 16, %s185
      %s187 = ssub.s32 1, %s186
      %s188 = smul.u32 16, %s187
      %p189 = scmp.lt.s32.totalorder %s186, 0
      %s190 = scalar_select %p189, %s186, 0
      %s191 = scalar_lea.vmem %s1, %s190
      %p192 = pneg %p84
      %p193 = pneg %p81
      %p194 = pneg %p110
      %p195 = pneg %p107
      %p196 = scmp.lt.s32.totalorder %s17, 1
      %s197 = scalar_select %p196, %s17, 1
      %s198 = smul.addr %s197, 2
      %s199 = smul.addr %s198, 8
      %s200 = scalar_lea.vmem %s2, %s199
      %s201 = sadd.s32 %s17, %s18
      %p202 = scmp.lt.s32.totalorder %s201, 0
      %s203 = scalar_select %p202, %s201, 0
      %s204 = smul.u32 16, %s203
      %s205 = ssub.s32 1, %s204
      %s206 = smul.u32 16, %s205
      %p207 = scmp.lt.s32.totalorder %s204, 0
      %s208 = scalar_select %p207, %s204, 0
      %s209 = scalar_lea.vmem %s0, %s208
      %s210 = sadd.s32 %s17, %s18
      %p211 = scmp.lt.s32.totalorder %s210, 0
      %s212 = scalar_select %p211, %s210, 0
      %s213 = smul.u32 16, %s212
      %s214 = ssub.s32 1, %s213
      %s215 = smul.u32 16, %s214
      %s216 = sadd.s32 %s17, %s18
      %p217 = scmp.lt.s32.totalorder %s216, 0
      %s218 = scalar_select %p217, %s216, 0
      %s219 = smul.u32 16, %s218
      %s220 = ssub.s32 1, %s219
      %s221 = smul.u32 16, %s220
      %p222 = scmp.lt.s32.totalorder %s219, 0
      %s223 = scalar_select %p222, %s219, 0
      %s224 = scalar_lea.vmem %s1, %s223
      %s225 = sadd.s32 %s17, %s18
      %p226 = scmp.lt.s32.totalorder %s225, 0
      %s227 = scalar_select %p226, %s225, 0
      %s228 = smul.u32 16, %s227
      %s229 = ssub.s32 1, %s228
      %s230 = smul.u32 16, %s229
      %p231 = scmp.lt.s32.totalorder %s17, 1
      %s232 = scalar_select %p231, %s17, 1
      %s233 = smul.addr %s232, 2
      %s234 = smul.addr %s233, 8
      %s235 = scalar_lea.vmem %s2, %s234
      %p236 = scmp.eq.s32.totalorder %s18, 0
      // Predicated region
      $region29: #{multi_task_loss.1} parent=27 // pred_check
        %p237 = pneg %p236
      $region30: #{multi_task_loss.1} parent=27 // pred_check_branch
        %239 = sbr.rel (%p237) target = $region32
      $region31: #{multi_task_loss.1} parent=27 // pred_region
        %240 = vst [vmem:[%s235] sm:$0xff] 0.0
        %241 = vst [vmem:[%s235 + $0x8] sm:$0xff] 0.0
      $region32: #{multi_task_loss.1} parent=27 // pred_fallthru
        _
      %v242 = vld [vmem:[%s209] sm:$0xff]
      %v243 = vld [vmem:[%s209 + $0x8] sm:$0xff]
      %v244 = vld [vmem:[%s224] sm:$0xff]
      %v245 = vld [vmem:[%s224 + $0x8] sm:$0xff]
      %s246 = sadd.s32 %s17, %s18
      %p247 = scmp.lt.s32.totalorder %s246, 0
      %s248 = scalar_select %p247, %s246, 0
      %v249 = vlaneseq
      %v250 = vshrl.u32 %v249, 7
      %v251 = vadd.s32 %v250, 8
      %v252 = vlaneseq
      %v253 = vand.u32 %v252, 127
      %s254 = smul.u32 %s248, 2048
      %v255 = vmul.u32 %v250, 128
      %v256 = vmul.u32 %v251, 128
      %v257 = vstv %s254
      %v258 = vadd.s32 %v257, %v255
      %v259 = vadd.s32 %v257, %v256
      %v260 = vadd.s32 %v258, %v253
      %v261 = vadd.s32 %v259, %v253
      %vm262 = vcmp.lt.s32.totalorder %v260, 28
      %vm263 = vcmp.lt.s32.totalorder %v261, 28
      %p264 = scmp.lt.s32.totalorder %s246, 1
      %s265 = scalar_select %p264, 1, 0
      %v266 = vstv %s265
      %vm267 = vcmp.eq.s32.totalorder %v266, 1
      %vm268 = vmand %vm262, %vm267
      %vm269 = vmand %vm263, %vm267
      %vm270 = vcmp.lt.s32.totalorder %v260, 0
      %v271 = vsub.s32 0, %v260
      %v272 = vsel %vm270, %v271, %v260
      %v273 = vmul.u32.u64.compose %v272, 2454267026
      %v274 = vextract.low.u32 %v273
      %v275 = vextract.high.u32 %v273
      %vm276 = vc.u32 %v274, 2454267026
      %v277 = vsel %vm276, 1, 0
      %v278 = vadd.s32 %v275, %v277
      %v279 = vshrl.u32 %v278, 2
      %v280 = vmul.u32 %v279, 7
      %v281 = vsub.s32 %v272, %v280
      %v282 = vsub.s32 0, %v281
      %v283 = vsel %vm270, %v282, %v281
      %vm284 = vcmp.lt.s32.totalorder %v261, 0
      %v285 = vsub.s32 0, %v261
      %v286 = vsel %vm284, %v285, %v261
      %v287 = vmul.u32.u64.compose %v286, 2454267026
      %v288 = vextract.low.u32 %v287
      %v289 = vextract.high.u32 %v287
      %vm290 = vc.u32 %v288, 2454267026
      %v291 = vsel %vm290, 1, 0
      %v292 = vadd.s32 %v289, %v291
      %v293 = vshrl.u32 %v292, 2
      %v294 = vmul.u32 %v293, 7
      %v295 = vsub.s32 %v286, %v294
      %v296 = vsub.s32 0, %v295
      %v297 = vsel %vm284, %v296, %v295
      %vm298 = vcmp.ne.s32.totalorder %v283, 0
      %vm299 = vcmp.ne.s32.totalorder %v297, 0
      %vm300 = vcmp.lt.s32.totalorder %v283, 0
      %vm301 = vcmp.lt.s32.totalorder %v297, 0
      %vm302 = vmand %vm300, %vm298
      %vm303 = vmand %vm301, %vm299
      %v304 = vadd.s32 %v283, 7
      %v305 = vadd.s32 %v297, 7
      %v306 = vsel %vm302, %v304, %v283
      %v307 = vsel %vm303, %v305, %v297
      %vm308 = vcmp.lt.s32.totalorder %v306, 5
      %vm309 = vcmp.lt.s32.totalorder %v307, 5
      %v310 = vmax.f32 %v242, 0.0
      %v311 = vmax.f32 %v243, 0.0
      %v312 = vmul.f32 %v242, %v244
      %v313 = vmul.f32 %v243, %v245
      %v314 = vsub.f32 %v310, %v312
      %v315 = vsub.f32 %v311, %v313
      %v316 = vand.u32 2147483647, %v242
      %v317 = vand.u32 2147483647, %v243
      %v318 = vsub.f32 0.0, %v316
      %v319 = vsub.f32 0.0, %v317
      %v320 = vmul.f32 %v318, 1.442695
      %v321 = vpow.pop %v320
      %v322 = vmul.f32 %v319, 1.442695
      %v323 = vpow.pop %v322
      %v324 = vadd.f32 %v321, 1.0
      %v325 = vlog2.pop %v324
      %v326 = vmul.f32 %v325, 0.6931472
      %v327 = vmul.f32 -0.5, %v321
      %v328 = vadd.f32 %v327, 1.0
      %v329 = vmul.f32 %v328, %v321
      %v330 = vand.u32 2147483647, %v321
      %vm331 = vcmp.lt.f32.partialorder %v330, 0.0004427343
      %v332 = vsel %vm331, %v329, %v326
      %v333 = vadd.f32 %v323, 1.0
      %v334 = vlog2.pop %v333
      %v335 = vmul.f32 %v334, 0.6931472
      %v336 = vmul.f32 -0.5, %v323
      %v337 = vadd.f32 %v336, 1.0
      %v338 = vmul.f32 %v337, %v323
      %v339 = vand.u32 2147483647, %v323
      %vm340 = vcmp.lt.f32.partialorder %v339, 0.0004427343
      %v341 = vsel %vm340, %v338, %v335
      %v342 = vadd.f32 %v314, %v332
      %v343 = vadd.f32 %v315, %v341
      %v344 = vsub.f32 %v242, %v244
      %v345 = vsub.f32 %v243, %v245
      %v346 = vand.u32 2147483647, %v344
      %v347 = vand.u32 2147483647, %v345
      %vm348 = vcmp.lt.f32.partialorder %v346, 1.0
      %vm349 = vcmp.lt.f32.partialorder %v347, 1.0
      %v350 = vmul.f32 %v344, 0.5
      %v351 = vmul.f32 %v345, 0.5
      %v352 = vmul.f32 %v350, %v344
      %v353 = vmul.f32 %v351, %v345
      %v354 = vsub.f32 %v346, 0.5
      %v355 = vsub.f32 %v347, 0.5
      %v356 = vsel %vm348, %v352, %v354
      %v357 = vsel %vm349, %v353, %v355
      %vm358 = vmand %vm268, %vm308
      %vm359 = vmand %vm269, %vm309
      %v360 = vsel %vm358, %v342, 0.0
      %v361 = vsel %vm359, %v343, 0.0
      %vm362 = vmxor %vm308, 1
      %vm363 = vmxor %vm309, 1
      %vm364 = vmand %vm268, %vm362
      %vm365 = vmand %vm269, %vm363
      %v366 = vsel %vm364, %v356, 0.0
      %v367 = vsel %vm365, %v357, 0.0
      %v368 = vadd.f32 %v360, %v361
      %v369 = vadd.f32 %v366, %v367
      %v370 = vld [vmem:[%s235] sm:$0xff]
      %v371 = vadd.f32 %v370, %v368
      %372 = vst [vmem:[%s235] sm:$0xff] %v371
      %s373 = scalar_lea.vmem %s235, 8
      %v374 = vld [vmem:[%s373] sm:$0xff]
      %v375 = vadd.f32 %v374, %v369
      %376 = vst [vmem:[%s373] sm:$0xff] %v375
      %p377 = scmp.lt.s32.totalorder %s17, 1
      %s378 = scalar_select %p377, %s17, 1
      %s379 = smul.addr %s378, 2
      %s380 = smul.addr %s379, 8
      %s381 = scalar_lea.vmem %s2, %s380
      // Predicated region
      $region33: #{multi_task_loss.1} parent=27 // pred_check
        %p382 = pneg %p107
      $region34: #{multi_task_loss.1} parent=27 // pred_check_branch
        %384 = sbr.rel (%p382) target = $region36
      $region35: #{multi_task_loss.1} parent=27 // pred_region
        _
      $region36: #{multi_task_loss.1} parent=27 // pred_fallthru
        _
    $region28: #{multi_task_loss.1} parent=5 // pred_fallthru
      _
    %p385 = scmp.le.s32.totalorder 2, %s8
    // Predicated region
    $region37: #{multi_task_loss.1} parent=5 // pred_check
      %p386 = pneg %p385
    $region38: #{multi_task_loss.1} parent=5 // pred_check_branch
      %388 = sbr.rel (%p386) target = $region40
    $region39: #{multi_task_loss.1} parent=5 // pred_region
      %s389 = ssub.s32 %s8, 2
      // Predicated region
      $region41: #{multi_task_loss.1} parent=39 // pred_check
        %p390 = pneg %p113
      $region42: #{multi_task_loss.1} parent=39 // pred_check_branch
        %392 = sbr.rel (%p390) target = $region44
      $region43: #{multi_task_loss.1} parent=39 // pred_region
        %p393 = scmp.lt.s32.totalorder %s19, 1
        %s394 = scalar_select %p393, %s19, 1
        %s395 = smul.addr %s394, 2
        %s396 = smul.addr %s395, 8
        %s397 = scalar_lea.vmem %s2, %s396
      $region44: #{multi_task_loss.1} parent=39 // pred_fallthru
        _
    $region40: #{multi_task_loss.1} parent=5 // pred_fallthru
      _
  $region6: #{multi_task_loss.1} parent=0 // loop_footer
    %s12 = sadd.s32 1, %s8
  $region7: #{multi_task_loss.1} parent=0 // loop_footer_branch
    %7 = sbr.rel target = $region3
  $region8: #{multi_task_loss.1} parent=0 // loop_exit
    _

</llo_original>
